<compile_context>
chip_gen: v6e
topology: v6e:2x2x1
jax: 0.10.0
libtpu: 0.0.40
codegen_flags: <defaults>
</compile_context>

<pallas_src>
import functools

import jax
import jax.numpy as jnp
import numpy as np
from jax import lax
from jax.experimental import pallas as pl
from jax.experimental.pallas import tpu as pltpu

SELU_ALPHA = 1.6732632423543772
SELU_SCALE = 1.0507009873554805


def _dmon_kernel(nodes_ref, adj_ref, w_ref, b_ref,
                 pooled_ref, assign_t_ref, cs_ref, stats_ref,
                 s_nk, pg_acc, v_acc, *, n_valid):
    t = pl.program_id(1)
    n_tiles = pl.num_programs(1)
    tile_rows = adj_ref.shape[1]

    # ---- once per graph (t == 0): encoder, softmax, pooled features --------
    @pl.when(t == 0)
    def _init():
        x = nodes_ref[0]                                      # [N, d]
        w = w_ref[...]                                        # [k, d]
        logits = lax.dot_general(x, w, (((1,), (1,)), ((), ())),
                                 preferred_element_type=jnp.float32)
        logits = logits + b_ref[...]                          # [N, k] f32
        m = jnp.max(logits, axis=-1, keepdims=True)
        e = jnp.exp(logits - m)
        s = e * (1.0 / jnp.sum(e, axis=-1, keepdims=True))    # exact recip
        if n_valid < s.shape[0]:                              # static check
            row = lax.broadcasted_iota(jnp.int32, s.shape, 0)
            s = jnp.where(row < n_valid, s, 0.0)               # mask padded rows
        s_nk[...] = s.astype(s_nk.dtype)                      # MXU RHS (hot loop)
        assign_t_ref[0] = s.T                                 # [k, N] lane-dense,
                                                              # resident across t
        cs = jnp.sum(s, axis=0, keepdims=True)                # [1, k]
        cs_ref[0] = cs
        s_pool = (s * (1.0 / cs)).astype(x.dtype)
        pf = lax.dot_general(s_pool, x, (((0,), (0,)), ((), ())),
                             preferred_element_type=jnp.float32)   # [k, d]
        pf = SELU_SCALE * jnp.where(pf > 0, pf,
                                    SELU_ALPHA * (jnp.exp(pf) - 1.0))
        pooled_ref[0] = pf
        pg_acc[...] = jnp.zeros_like(pg_acc)
        v_acc[...] = jnp.zeros_like(v_acc)

    # ---- hot loop: stream one (tile_rows x N) adjacency slab ---------------
    a_tile = adj_ref[0]                                       # [tr, N] native dt
    row0 = pl.multiple_of(t * tile_rows, tile_rows)
    a_s = jnp.dot(a_tile, s_nk[...],
                  preferred_element_type=jnp.float32)         # [tr, k] f32
    s_tile = s_nk[pl.ds(row0, tile_rows), :].astype(jnp.float32)
    pg_acc[...] += jnp.sum(a_s * s_tile, axis=0, keepdims=True)   # diag(S^T A S)
    v_acc[...] += jnp.sum(a_s, axis=0, keepdims=True)             # deg^T S

    # ---- once per graph (last tile): modularity statistics -----------------
    @pl.when(t == n_tiles - 1)
    def _finalize():
        v = v_acc[...]                                        # [1, k]
        num_edges = jnp.sum(v)                                # rows of S sum to 1
        norm_diag = v * v / (2.0 * num_edges)                 # [1, k]
        diag_sum = jnp.sum(pg_acc[...] - norm_diag)           # scalar
        lane = lax.broadcasted_iota(jnp.int32, (1, 128), 1)
        stats_ref[0] = jnp.where(lane == 0, diag_sum,
                                 jnp.where(lane == 1, num_edges, 0.0))


def _round_up(x, m):
    return -(-x // m) * m


def _vmem_block_bytes(shape, dtype):
    """Approximate VMEM footprint of a block, honoring (8*pack, 128) tiling."""
    itemsize = np.dtype(dtype).itemsize
    shape = tuple(int(s) for s in shape)
    if len(shape) < 2:
        shape = (1,) * (2 - len(shape)) + shape
    pack = max(1, 4 // itemsize)
    lead = 1
    for s in shape[:-2]:
        lead *= s
    r = _round_up(shape[-2], 8 * pack)
    c = _round_up(shape[-1], 128)
    return lead * r * c * itemsize


def dmon_forward(nodes, adjacency, weight, bias, *, n_clusters,
                 collapse_regularization=0.1, do_unpooling=False,
                 slab_bytes=None, max_row_tile=None):
    B, N, d = nodes.shape
    k = n_clusters

    if adjacency.ndim == 2:
        adjacency = adjacency[None]
    adj_b = adjacency.shape[0]
    assert adjacency.shape[-1] == adjacency.shape[-2] == N, \
        "adjacency must be square and match the node count"
    assert adj_b in (1, B), "adjacency batch must be 1 (shared) or B"
    shared_adj = (adj_b == 1) and (B > 1)      # broadcast via index_map, no tile

    # Stream adjacency in its native floating dtype (no wrapper bf16 round-trip).
    if not jnp.issubdtype(adjacency.dtype, jnp.floating):
        adjacency = adjacency.astype(jnp.float32)
    adt = adjacency.dtype
    itemsize = np.dtype(adt).itemsize

    # Generation-aware VMEM budgeting.
    try:
        vmem_cap = int(pltpu.get_tpu_info().vmem_capacity_bytes)
    except Exception:
        vmem_cap = 64 << 20                    # conservative (v7x-sized) fallback
    small_vmem = vmem_cap <= (64 << 20)
    if slab_bytes is None:
        slab_bytes = (4 << 20) if small_vmem else (8 << 20)
    if max_row_tile is None:
        max_row_tile = 512 if small_vmem else 1024

    # Row tiling: whole graph if it fits one slab, else 128-aligned tiles with
    # N zero-padded up to a multiple of the tile (no whole-graph fallback).
    if N * N * itemsize <= slab_bytes or N <= 128:
        row_tile, n_pad = N, N
    else:
        rt = max(128, min(max_row_tile, slab_bytes // max(1, N * itemsize)))
        row_tile = max(128, (rt // 128) * 128)
        n_pad = _round_up(N, row_tile)
    n_tiles = n_pad // row_tile

    nodes_in, adj_in = nodes, adjacency
    if n_pad > N:
        pad = n_pad - N
        nodes_in = jnp.pad(nodes, ((0, 0), (0, pad), (0, 0)))
        adj_in = jnp.pad(adjacency, ((0, 0), (0, pad), (0, pad)))

    w_in = weight.astype(nodes.dtype)
    bias2d = bias.reshape(1, k).astype(jnp.float32)

    # VMEM estimate including the lane padding of [*, k] blocks/scratch.
    est_vmem = (
        2 * _vmem_block_bytes((n_pad, d), nodes_in.dtype)     # nodes block
        + 2 * _vmem_block_bytes((row_tile, n_pad), adt)       # adjacency slab
        + 2 * _vmem_block_bytes((k, d), w_in.dtype)           # weight
        + 2 * _vmem_block_bytes((1, k), jnp.float32)          # bias
        + 2 * _vmem_block_bytes((k, d), jnp.float32)          # pooled out
        + 2 * _vmem_block_bytes((k, n_pad), jnp.float32)      # assignments out
        + 2 * _vmem_block_bytes((1, k), jnp.float32)          # cluster sizes out
        + 2 * _vmem_block_bytes((1, 128), jnp.float32)        # stats out
        + _vmem_block_bytes((n_pad, k), adt)                  # S scratch (padded!)
        + 2 * _vmem_block_bytes((1, k), jnp.float32)          # pg / v accumulators
    )
    vmem_limit = int(min(max(int(1.5 * est_vmem) + (1 << 20), 32 << 20),
                         int(0.75 * vmem_cap)))

    adj_map = (lambda b, t: (0, t, 0)) if shared_adj else (lambda b, t: (b, t, 0))
    kernel = functools.partial(_dmon_kernel, n_valid=N)

    pooled, assign_t, cs, stats = pl.pallas_call(
        kernel,
        out_shape=(
            jax.ShapeDtypeStruct((B, k, d), jnp.float32),      # pooled features
            jax.ShapeDtypeStruct((B, k, n_pad), jnp.float32),  # S^T (lane dense)
            jax.ShapeDtypeStruct((B, 1, k), jnp.float32),      # cluster sizes
            jax.ShapeDtypeStruct((B, 1, 128), jnp.float32),    # [diag_sum, E]
        ),
        grid_spec=pltpu.PrefetchScalarGridSpec(
            num_scalar_prefetch=0,
            grid=(B, n_tiles),
            in_specs=[
                pl.BlockSpec((1, n_pad, d), lambda b, t: (b, 0, 0)),     # nodes
                pl.BlockSpec((1, row_tile, n_pad), adj_map),             # adjacency
                pl.BlockSpec((k, d), lambda b, t: (0, 0)),               # W
                pl.BlockSpec((1, k), lambda b, t: (0, 0)),               # bias
            ],
            out_specs=[
                pl.BlockSpec((1, k, d), lambda b, t: (b, 0, 0)),
                pl.BlockSpec((1, k, n_pad), lambda b, t: (b, 0, 0)),
                pl.BlockSpec((1, 1, k), lambda b, t: (b, 0, 0)),
                pl.BlockSpec((1, 1, 128), lambda b, t: (b, 0, 0)),
            ],
            scratch_shapes=[
                pltpu.VMEM((n_pad, k), adt),        # S (MXU RHS for the hot loop)
                pltpu.VMEM((1, k), jnp.float32),    # diag(S^T A S) accumulator
                pltpu.VMEM((1, k), jnp.float32),    # v = deg^T S accumulator
            ],
        ),
        compiler_params=pltpu.CompilerParams(
            dimension_semantics=("parallel", "arbitrary"),
            vmem_limit_bytes=vmem_limit),
    )(nodes_in, adj_in, w_in, bias2d)

    assignments = jnp.swapaxes(assign_t, 1, 2)[:, :N, :]      # [B, N, k]
    cluster_sizes = cs[:, 0, :]                               # [B, k]
    diag_sum_per_b = stats[:, 0, 0]                           # [B]
    num_edges = stats[:, 0, 1]                                # [B]

    # modularity_loss follows the PyTorch code exactly: the diagonal sum is
    # taken over ALL batches, then divided by each batch's num_edges and B,
    # and finally averaged over the batch.
    total_diag = jnp.sum(diag_sum_per_b)
    modularity_loss = jnp.mean(-total_diag / 2.0 / num_edges / float(B))

    collapse = (jnp.linalg.norm(cluster_sizes, axis=-1) / float(N)
                * jnp.sqrt(jnp.float32(k)) - 1.0)
    collapse_loss = jnp.mean(collapse_regularization * collapse)

    pooled_features = pooled
    if do_unpooling:
        s_pool = assignments / cluster_sizes[:, None, :]
        pooled_features = jnp.einsum('bnk,bkd->bnd', s_pool, pooled)

    return pooled_features, assignments, modularity_loss, collapse_loss


def _dmon_reference(nodes, adjacency, weight, bias, *, n_clusters,
                    collapse_regularization=0.1, do_unpooling=False):
    """Pure-JAX f32 mirror of the PyTorch forward (numerics check)."""
    B, N, _ = nodes.shape
    k = n_clusters
    logits = jnp.einsum('bnd,kd->bnk', nodes, weight) + bias[None, None, :]
    s = jax.nn.softmax(logits, axis=-1)
    cluster_sizes = jnp.sum(s, axis=1)                              # [B, k]
    s_pool = s / cluster_sizes[:, None, :]
    degrees = jnp.sum(adjacency, axis=1)[..., None]                 # [B, N, 1]
    num_edges = jnp.sum(degrees, axis=(-1, -2))                     # [B]
    pooled_graph = jnp.swapaxes(jnp.matmul(adjacency, s), 1, 2)
    pooled_graph = jnp.matmul(pooled_graph, s)                      # [B, k, k]
    dyad_left = jnp.matmul(jnp.swapaxes(s, 1, 2), degrees)
    dyad_right = jnp.matmul(jnp.swapaxes(degrees, 1, 2), s)
    normalizer = jnp.matmul(dyad_left, dyad_right) / 2.0 / num_edges[:, None, None]
    diag = jnp.diagonal(pooled_graph - normalizer, axis1=-2, axis2=-1)
    modularity_loss = jnp.mean(-jnp.sum(diag) / 2.0 / num_edges / float(B))
    collapse_loss = jnp.mean(collapse_regularization *
                             (jnp.linalg.norm(cluster_sizes, axis=-1) / float(N)
                              * jnp.sqrt(jnp.float32(k)) - 1.0))
    pooled = jnp.matmul(jnp.swapaxes(s_pool, 1, 2), nodes)
    pooled = jax.nn.selu(pooled)
    if do_unpooling:
        pooled = jnp.matmul(s_pool, pooled)
    return pooled, s, modularity_loss, collapse_loss


def _check(out, ref):
    pooled, assign, mod, col = out
    rp, ra, rm, rc = ref
    np.testing.assert_allclose(np.asarray(assign), np.asarray(ra),
                               atol=1e-4, rtol=1e-4)
    np.testing.assert_allclose(np.asarray(pooled), np.asarray(rp),
                               atol=1e-3, rtol=1e-3)
    np.testing.assert_allclose(float(mod), float(rm), atol=1e-3)
    np.testing.assert_allclose(float(col), float(rc), atol=1e-3)


def _make_inputs(key, B, N, d, k, adj_batch):
    k_nodes, k_adj, k_w = jax.random.split(key, 3)
    nodes = jax.random.normal(k_nodes, (B, N, d), dtype=jnp.float32)
    raw = jnp.abs(jax.random.normal(k_adj, (adj_batch, N, N), dtype=jnp.float32))
    adjacency = 0.5 * (raw + jnp.swapaxes(raw, 1, 2))   # symmetric, non-negative
    a0 = jax.random.normal(k_w, (d, k), dtype=jnp.float32)
    q, _ = jnp.linalg.qr(a0)                            # orthonormal columns
    weight = q.T                                        # [k, d] orthogonal init
    bias = jnp.zeros((k,), dtype=jnp.float32)
    return nodes, adjacency, weight, bias


if __name__ == "__main__":
    key = jax.random.PRNGKey(0)
    k1, k2 = jax.random.split(key)

    # --- test 1: per-batch adjacency, single-tile path -----------------------
    B, N, d, k = 2, 16, 32, 8
    nodes, adjacency, weight, bias = _make_inputs(k1, B, N, d, k, adj_batch=B)
    out = dmon_forward(nodes, adjacency, weight, bias,
                       n_clusters=k, collapse_regularization=0.1)
    jax.block_until_ready(out)
    assert out[0].shape == (B, k, d) and out[1].shape == (B, N, k)
    _check(out, _dmon_reference(nodes, adjacency, weight, bias,
                                n_clusters=k, collapse_regularization=0.1))

    # --- test 2: shared [1, N, N] adjacency broadcast via index_map ----------
    adj_shared = adjacency[:1]
    out = dmon_forward(nodes, adj_shared, weight, bias,
                       n_clusters=k, collapse_regularization=0.1)
    jax.block_until_ready(out)
    _check(out, _dmon_reference(nodes, jnp.tile(adj_shared, (B, 1, 1)),
                                weight, bias,
                                n_clusters=k, collapse_regularization=0.1))

    # --- test 3: forced multi-tile streaming with N padded to 2 x 128 --------
    B3, N3, d3, k3 = 1, 160, 32, 8
    nodes3, adj3, w3, b3 = _make_inputs(k2, B3, N3, d3, k3, adj_batch=B3)
    out3 = dmon_forward(nodes3, adj3, w3, b3,
                        n_clusters=k3, collapse_regularization=0.1,
                        slab_bytes=64 * 1024)           # force row_tile=128 path
    jax.block_until_ready(out3)
    assert out3[0].shape == (B3, k3, d3) and out3[1].shape == (B3, N3, k3)
    _check(out3, _dmon_reference(nodes3, adj3, w3, b3,
                                 n_clusters=k3, collapse_regularization=0.1))

    print("KERNEL_OK")
</pallas_src>

<mosaic_0001>
module attributes {stable_mosaic.version = 11 : i64} {
  func.func @_dmon_kernel(%arg0: i32, %arg1: i32, %arg2: memref<1x16x32xf32, #tpu.memory_space<vmem>>, %arg3: memref<1x16x16xf32, #tpu.memory_space<vmem>>, %arg4: memref<8x32xf32, #tpu.memory_space<vmem>>, %arg5: memref<1x8xf32, #tpu.memory_space<vmem>>, %arg6: memref<1x8x32xf32, #tpu.memory_space<vmem>>, %arg7: memref<1x8x16xf32, #tpu.memory_space<vmem>>, %arg8: memref<1x1x8xf32, #tpu.memory_space<vmem>>, %arg9: memref<1x1x128xf32, #tpu.memory_space<vmem>>, %arg10: memref<16x8xf32, #tpu.memory_space<vmem>>, %arg11: memref<1x8xf32, #tpu.memory_space<vmem>>, %arg12: memref<1x8xf32, #tpu.memory_space<vmem>>) attributes {dimension_semantics = [#tpu.dimension_semantics<parallel>, #tpu.dimension_semantics<arbitrary>], iteration_bounds = array<i64: 2, 1>, scalar_prefetch = 0 : i64, scratch_operands = 3 : i64, tpu.core_type = #tpu.core_type<tc>, window_params = [{transform_indices = @transform_0, window_bounds = array<i64: 1, 16, 32>}, {transform_indices = @transform_1, window_bounds = array<i64: 1, 16, 16>}, {pipeline_mode = #tpu.pipeline_mode<synchronous>, transform_indices = @transform_2, window_bounds = array<i64: 8, 32>}, {pipeline_mode = #tpu.pipeline_mode<synchronous>, transform_indices = @transform_3, window_bounds = array<i64: 1, 8>}, {transform_indices = @transform_4, window_bounds = array<i64: 1, 8, 32>}, {transform_indices = @transform_5, window_bounds = array<i64: 1, 8, 16>}, {transform_indices = @transform_6, window_bounds = array<i64: 1, 1, 8>}, {transform_indices = @transform_7, window_bounds = array<i64: 1, 1, 128>}]} {
    %c0_i32 = arith.constant 0 : i32
    %0 = arith.cmpi eq, %arg1, %c0_i32 : i32
    %1 = arith.extui %0 : i1 to i32
    %c0_i32_0 = arith.constant 0 : i32
    %2 = arith.cmpi ne, %1, %c0_i32_0 : i32
    scf.if %2 {
      %c0_18 = arith.constant 0 : index
      %c0_19 = arith.constant 0 : index
      %c0_20 = arith.constant 0 : index
      %25 = vector.load %arg2[%c0_18, %c0_19, %c0_20] : memref<1x16x32xf32, #tpu.memory_space<vmem>>, vector<1x16x32xf32>
      %26 = vector.shape_cast %25 : vector<1x16x32xf32> to vector<16x32xf32>
      %c0_21 = arith.constant 0 : index
      %c0_22 = arith.constant 0 : index
      %27 = vector.load %arg4[%c0_21, %c0_22] : memref<8x32xf32, #tpu.memory_space<vmem>>, vector<8x32xf32>
      %cst_23 = arith.constant dense<0.000000e+00> : vector<16x8xf32>
      %28 = tpu.matmul %26, %27, %cst_23 {dimension_numbers = #tpu.dot_dimension_numbers<[1], [1], [0], [0], [0, 0, 1, 0], [], []>} : vector<16x32xf32>, vector<8x32xf32>, vector<16x8xf32> -> vector<16x8xf32>
      %c0_24 = arith.constant 0 : index
      %c0_25 = arith.constant 0 : index
      %29 = vector.load %arg5[%c0_24, %c0_25] : memref<1x8xf32, #tpu.memory_space<vmem>>, vector<1x8xf32>
      %30 = vector.broadcast %29 : vector<1x8xf32> to vector<16x8xf32>
      %31 = arith.addf %28, %30 : vector<16x8xf32>
      %cst_26 = arith.constant dense<0xFF800000> : vector<16xf32>
      %32 = vector.multi_reduction <maximumf>, %31, %cst_26 [1] : vector<16x8xf32> to vector<16xf32>
      %33 = vector.shape_cast %32 : vector<16xf32> to vector<16x1xf32>
      %34 = vector.broadcast %33 : vector<16x1xf32> to vector<16x8xf32>
      %35 = arith.subf %31, %34 : vector<16x8xf32>
      %36 = math.exp %35 : vector<16x8xf32>
      %cst_27 = arith.constant dense<0.000000e+00> : vector<16xf32>
      %37 = vector.multi_reduction <add>, %36, %cst_27 [1] : vector<16x8xf32> to vector<16xf32>
      %38 = vector.shape_cast %37 : vector<16xf32> to vector<16x1xf32>
      %cst_28 = arith.constant 1.000000e+00 : f32
      %39 = vector.broadcast %cst_28 : f32 to vector<16x1xf32>
      %40 = arith.divf %39, %38 : vector<16x1xf32>
      %41 = vector.broadcast %40 : vector<16x1xf32> to vector<16x8xf32>
      %42 = arith.mulf %36, %41 : vector<16x8xf32>
      %c0_29 = arith.constant 0 : index
      %c0_30 = arith.constant 0 : index
      %43 = vector.load %arg10[%c0_29, %c0_30] : memref<16x8xf32, #tpu.memory_space<vmem>>, vector<16x8xf32>
      tpu.vector_store %arg10[%c0_29, %c0_30], %42 {strides = array<i32>} : memref<16x8xf32, #tpu.memory_space<vmem>>, vector<16x8xf32>,
      %44 = tpu.transpose %42, [1, 0] : vector<16x8xf32> -> vector<8x16xf32>
      %c0_31 = arith.constant 0 : index
      %c0_32 = arith.constant 0 : index
      %c0_33 = arith.constant 0 : index
      %45 = vector.load %arg7[%c0_31, %c0_32, %c0_33] : memref<1x8x16xf32, #tpu.memory_space<vmem>>, vector<1x8x16xf32>
      %46 = vector.shape_cast %45 : vector<1x8x16xf32> to vector<8x16xf32>
      %47 = vector.shape_cast %44 : vector<8x16xf32> to vector<1x8x16xf32>
      tpu.vector_store %arg7[%c0_31, %c0_32, %c0_33], %47 {strides = array<i32>} : memref<1x8x16xf32, #tpu.memory_space<vmem>>, vector<1x8x16xf32>,
      %cst_34 = arith.constant dense<0.000000e+00> : vector<8xf32>
      %48 = vector.multi_reduction <add>, %42, %cst_34 [0] : vector<16x8xf32> to vector<8xf32>
      %49 = vector.shape_cast %48 : vector<8xf32> to vector<1x8xf32>
      %c0_35 = arith.constant 0 : index
      %c0_36 = arith.constant 0 : index
      %c0_37 = arith.constant 0 : index
      %50 = vector.load %arg8[%c0_35, %c0_36, %c0_37] : memref<1x1x8xf32, #tpu.memory_space<vmem>>, vector<1x1x8xf32>
      %51 = vector.shape_cast %50 : vector<1x1x8xf32> to vector<1x8xf32>
      %52 = vector.shape_cast %49 : vector<1x8xf32> to vector<1x1x8xf32>
      tpu.vector_store %arg8[%c0_35, %c0_36, %c0_37], %52 {strides = array<i32>} : memref<1x1x8xf32, #tpu.memory_space<vmem>>, vector<1x1x8xf32>,
      %cst_38 = arith.constant 1.000000e+00 : f32
      %53 = vector.broadcast %cst_38 : f32 to vector<1x8xf32>
      %54 = arith.divf %53, %49 : vector<1x8xf32>
      %55 = vector.broadcast %54 : vector<1x8xf32> to vector<16x8xf32>
      %56 = arith.mulf %42, %55 : vector<16x8xf32>
      %cst_39 = arith.constant dense<0.000000e+00> : vector<8x32xf32>
      %57 = tpu.matmul %56, %26, %cst_39 {dimension_numbers = #tpu.dot_dimension_numbers<[0], [0], [1], [1], [0, 1, 1, 1], [], []>} : vector<16x8xf32>, vector<16x32xf32>, vector<8x32xf32> -> vector<8x32xf32>
      %cst_40 = arith.constant 0.000000e+00 : f32
      %58 = vector.broadcast %cst_40 : f32 to vector<8x32xf32>
      %59 = arith.cmpf ogt, %57, %58 : vector<8x32xf32>
      %60 = math.exp %57 : vector<8x32xf32>
      %cst_41 = arith.constant 1.000000e+00 : f32
      %61 = vector.broadcast %cst_41 : f32 to vector<8x32xf32>
      %62 = arith.subf %60, %61 : vector<8x32xf32>
      %cst_42 = arith.constant 1.67326319 : f32
      %63 = vector.broadcast %cst_42 : f32 to vector<8x32xf32>
      %64 = arith.mulf %63, %62 : vector<8x32xf32>
      %65 = arith.select %59, %57, %64 : vector<8x32xi1>, vector<8x32xf32>
      %cst_43 = arith.constant 1.05070102 : f32
      %66 = vector.broadcast %cst_43 : f32 to vector<8x32xf32>
      %67 = arith.mulf %66, %65 : vector<8x32xf32>
      %c0_44 = arith.constant 0 : index
      %c0_45 = arith.constant 0 : index
      %c0_46 = arith.constant 0 : index
      %68 = vector.load %arg6[%c0_44, %c0_45, %c0_46] : memref<1x8x32xf32, #tpu.memory_space<vmem>>, vector<1x8x32xf32>
      %69 = vector.shape_cast %68 : vector<1x8x32xf32> to vector<8x32xf32>
      %70 = vector.shape_cast %67 : vector<8x32xf32> to vector<1x8x32xf32>
      tpu.vector_store %arg6[%c0_44, %c0_45, %c0_46], %70 {strides = array<i32>} : memref<1x8x32xf32, #tpu.memory_space<vmem>>, vector<1x8x32xf32>,
      %cst_47 = arith.constant 0.000000e+00 : f32
      %71 = vector.broadcast %cst_47 : f32 to vector<1x8xf32>
      %c0_48 = arith.constant 0 : index
      %c0_49 = arith.constant 0 : index
      %72 = vector.load %arg11[%c0_48, %c0_49] : memref<1x8xf32, #tpu.memory_space<vmem>>, vector<1x8xf32>
      tpu.vector_store %arg11[%c0_48, %c0_49], %71 {strides = array<i32>} : memref<1x8xf32, #tpu.memory_space<vmem>>, vector<1x8xf32>,
      %cst_50 = arith.constant 0.000000e+00 : f32
      %73 = vector.broadcast %cst_50 : f32 to vector<1x8xf32>
      %c0_51 = arith.constant 0 : index
      %c0_52 = arith.constant 0 : index
      %74 = vector.load %arg12[%c0_51, %c0_52] : memref<1x8xf32, #tpu.memory_space<vmem>>, vector<1x8xf32>
      tpu.vector_store %arg12[%c0_51, %c0_52], %73 {strides = array<i32>} : memref<1x8xf32, #tpu.memory_space<vmem>>, vector<1x8xf32>,
    } else {
    }
    %c0 = arith.constant 0 : index
    %c0_1 = arith.constant 0 : index
    %c0_2 = arith.constant 0 : index
    %3 = vector.load %arg3[%c0, %c0_1, %c0_2] : memref<1x16x16xf32, #tpu.memory_space<vmem>>, vector<1x16x16xf32>
    %4 = vector.shape_cast %3 : vector<1x16x16xf32> to vector<16x16xf32>
    %c16_i32 = arith.constant 16 : i32
    %5 = arith.muli %arg1, %c16_i32 : i32
    %6 = tpu.assume_multiple %5, 16 : i32
    %c0_3 = arith.constant 0 : index
    %c0_4 = arith.constant 0 : index
    %7 = vector.load %arg10[%c0_3, %c0_4] : memref<16x8xf32, #tpu.memory_space<vmem>>, vector<16x8xf32>
    %cst = arith.constant dense<0.000000e+00> : vector<16x8xf32>
    %8 = tpu.matmul %4, %7, %cst {dimension_numbers = #tpu.dot_dimension_numbers<[1], [0], [0], [1], [0, 0, 1, 1], [], []>} : vector<16x16xf32>, vector<16x8xf32>, vector<16x8xf32> -> vector<16x8xf32>
    %9 = arith.index_cast %6 : i32 to index
    %c0_5 = arith.constant 0 : index
    %10 = vector.load %arg10[%9, %c0_5] : memref<16x8xf32, #tpu.memory_space<vmem>>, vector<16x8xf32>
    %c0_6 = arith.constant 0 : index
    %c0_7 = arith.constant 0 : index
    %11 = vector.load %arg11[%c0_6, %c0_7] : memref<1x8xf32, #tpu.memory_space<vmem>>, vector<1x8xf32>
    %12 = arith.mulf %8, %10 : vector<16x8xf32>
    %cst_8 = arith.constant dense<0.000000e+00> : vector<8xf32>
    %13 = vector.multi_reduction <add>, %12, %cst_8 [0] : vector<16x8xf32> to vector<8xf32>
    %14 = vector.shape_cast %13 : vector<8xf32> to vector<1x8xf32>
    %15 = arith.addf %11, %14 : vector<1x8xf32>
    %c0_9 = arith.constant 0 : index
    %c0_10 = arith.constant 0 : index
    %16 = vector.load %arg11[%c0_9, %c0_10] : memref<1x8xf32, #tpu.memory_space<vmem>>, vector<1x8xf32>
    tpu.vector_store %arg11[%c0_9, %c0_10], %15 {strides = array<i32>} : memref<1x8xf32, #tpu.memory_space<vmem>>, vector<1x8xf32>,
    %c0_11 = arith.constant 0 : index
    %c0_12 = arith.constant 0 : index
    %17 = vector.load %arg12[%c0_11, %c0_12] : memref<1x8xf32, #tpu.memory_space<vmem>>, vector<1x8xf32>
    %cst_13 = arith.constant dense<0.000000e+00> : vector<8xf32>
    %18 = vector.multi_reduction <add>, %8, %cst_13 [0] : vector<16x8xf32> to vector<8xf32>
    %19 = vector.shape_cast %18 : vector<8xf32> to vector<1x8xf32>
    %20 = arith.addf %17, %19 : vector<1x8xf32>
    %c0_14 = arith.constant 0 : index
    %c0_15 = arith.constant 0 : index
    %21 = vector.load %arg12[%c0_14, %c0_15] : memref<1x8xf32, #tpu.memory_space<vmem>>, vector<1x8xf32>
    tpu.vector_store %arg12[%c0_14, %c0_15], %20 {strides = array<i32>} : memref<1x8xf32, #tpu.memory_space<vmem>>, vector<1x8xf32>,
    %c0_i32_16 = arith.constant 0 : i32
    %22 = arith.cmpi eq, %arg1, %c0_i32_16 : i32
    %23 = arith.extui %22 : i1 to i32
    %c0_i32_17 = arith.constant 0 : i32
    %24 = arith.cmpi ne, %23, %c0_i32_17 : i32
    scf.if %24 {
      %c0_18 = arith.constant 0 : index
      %c0_19 = arith.constant 0 : index
      %25 = vector.load %arg12[%c0_18, %c0_19] : memref<1x8xf32, #tpu.memory_space<vmem>>, vector<1x8xf32>
      %26 = vector.shape_cast %25 : vector<1x8xf32> to vector<1x1x8xf32>
      %cst_20 = arith.constant dense<0.000000e+00> : vector<1xf32>
      %27 = vector.multi_reduction <add>, %26, %cst_20 [1, 2] : vector<1x1x8xf32> to vector<1xf32>
      %28 = vector.shape_cast %27 : vector<1xf32> to vector<1x1x1xf32>
      %29 = vector.extract %28[0, 0, 0] : f32 from vector<1x1x1xf32>
      %30 = arith.mulf %25, %25 : vector<1x8xf32>
      %cst_21 = arith.constant 2.000000e+00 : f32
      %31 = arith.mulf %cst_21, %29 : f32
      %32 = vector.broadcast %31 : f32 to vector<1x8xf32>
      %33 = arith.divf %30, %32 : vector<1x8xf32>
      %c0_22 = arith.constant 0 : index
      %c0_23 = arith.constant 0 : index
      %34 = vector.load %arg11[%c0_22, %c0_23] : memref<1x8xf32, #tpu.memory_space<vmem>>, vector<1x8xf32>
      %35 = arith.subf %34, %33 : vector<1x8xf32>
      %36 = vector.shape_cast %35 : vector<1x8xf32> to vector<1x1x8xf32>
      %cst_24 = arith.constant dense<0.000000e+00> : vector<1xf32>
      %37 = vector.multi_reduction <add>, %36, %cst_24 [1, 2] : vector<1x1x8xf32> to vector<1xf32>
      %38 = vector.shape_cast %37 : vector<1xf32> to vector<1x1x1xf32>
      %39 = vector.extract %38[0, 0, 0] : f32 from vector<1x1x1xf32>
      %40 = tpu.iota {dimensions = array<i32: 1>} : vector<1x128xi32>
      %c0_i32_25 = arith.constant 0 : i32
      %41 = vector.broadcast %c0_i32_25 : i32 to vector<1x128xi32>
      %42 = arith.cmpi eq, %40, %41 : vector<1x128xi32>
      %c1_i32 = arith.constant 1 : i32
      %43 = vector.broadcast %c1_i32 : i32 to vector<1x128xi32>
      %44 = arith.cmpi eq, %40, %43 : vector<1x128xi32>
      %cst_26 = arith.constant 0.000000e+00 : f32
      %45 = vector.broadcast %29 : f32 to vector<1x128xf32>
      %46 = vector.broadcast %cst_26 : f32 to vector<1x128xf32>
      %47 = arith.select %44, %45, %46 : vector<1x128xi1>, vector<1x128xf32>
      %48 = vector.broadcast %39 : f32 to vector<1x128xf32>
      %49 = arith.select %42, %48, %47 : vector<1x128xi1>, vector<1x128xf32>
      %c0_27 = arith.constant 0 : index
      %c0_28 = arith.constant 0 : index
      %c0_29 = arith.constant 0 : index
      %50 = vector.load %arg9[%c0_27, %c0_28, %c0_29] : memref<1x1x128xf32, #tpu.memory_space<vmem>>, vector<1x1x128xf32>
      %51 = vector.shape_cast %50 : vector<1x1x128xf32> to vector<1x128xf32>
      %52 = vector.shape_cast %49 : vector<1x128xf32> to vector<1x1x128xf32>
      tpu.vector_store %arg9[%c0_27, %c0_28, %c0_29], %52 {strides = array<i32>} : memref<1x1x128xf32, #tpu.memory_space<vmem>>, vector<1x1x128xf32>,
    } else {
    }
    return
  }
  func.func @transform_0(%arg0: i32, %arg1: i32) -> (i32, i32, i32) {
    %c0_i32 = arith.constant 0 : i32
    %c0_i32_0 = arith.constant 0 : i32
    %c0_i32_1 = arith.constant 0 : i32
    return %arg0, %c0_i32, %c0_i32_0 : i32, i32, i32
  }
  func.func @transform_1(%arg0: i32, %arg1: i32) -> (i32, i32, i32) {
    %c0_i32 = arith.constant 0 : i32
    %c0_i32_0 = arith.constant 0 : i32
    return %arg0, %arg1, %c0_i32 : i32, i32, i32
  }
  func.func @transform_2(%arg0: i32, %arg1: i32) -> (i32, i32) {
    %c0_i32 = arith.constant 0 : i32
    %c0_i32_0 = arith.constant 0 : i32
    %c0_i32_1 = arith.constant 0 : i32
    return %c0_i32, %c0_i32_0 : i32, i32
  }
  func.func @transform_3(%arg0: i32, %arg1: i32) -> (i32, i32) {
    %c0_i32 = arith.constant 0 : i32
    %c0_i32_0 = arith.constant 0 : i32
    %c0_i32_1 = arith.constant 0 : i32
    return %c0_i32, %c0_i32_0 : i32, i32
  }
  func.func @transform_4(%arg0: i32, %arg1: i32) -> (i32, i32, i32) {
    %c0_i32 = arith.constant 0 : i32
    %c0_i32_0 = arith.constant 0 : i32
    %c0_i32_1 = arith.constant 0 : i32
    return %arg0, %c0_i32, %c0_i32_0 : i32, i32, i32
  }
  func.func @transform_5(%arg0: i32, %arg1: i32) -> (i32, i32, i32) {
    %c0_i32 = arith.constant 0 : i32
    %c0_i32_0 = arith.constant 0 : i32
    %c0_i32_1 = arith.constant 0 : i32
    return %arg0, %c0_i32, %c0_i32_0 : i32, i32, i32
  }
  func.func @transform_6(%arg0: i32, %arg1: i32) -> (i32, i32, i32) {
    %c0_i32 = arith.constant 0 : i32
    %c0_i32_0 = arith.constant 0 : i32
    %c0_i32_1 = arith.constant 0 : i32
    return %arg0, %c0_i32, %c0_i32_0 : i32, i32, i32
  }
  func.func @transform_7(%arg0: i32, %arg1: i32) -> (i32, i32, i32) {
    %c0_i32 = arith.constant 0 : i32
    %c0_i32_0 = arith.constant 0 : i32
    %c0_i32_1 = arith.constant 0 : i32
    return %arg0, %c0_i32, %c0_i32_0 : i32, i32, i32
  }
}

</mosaic_0001>

<llo_original>
// kernel: tpu_custom_call.1
$region0: #{tpu_custom_call.1}
  #allocation0 [shape = 'u32[]', space=smem, size = 0x4, offset = 0x4, fixed_abs, tag = 'smem constant byte address 0x4 - core index']
  #allocation1 [shape = 'u32[144,128]{1,0:T(1,128)}', space=vmem, size = 0x12000, scoped, tag = 'internal scratch']
  #allocation2 [shape = 'f32[16,8]{1,0:T(8,128)}', space=vmem, size = 0x2000, scoped, tag = 'scratch operand']
  #allocation3 [shape = 'f32[1,8]{1,0:T(1,128)}', space=vmem, size = 0x200, scoped, tag = 'scratch operand']
  #allocation4 [shape = 'f32[1,8]{1,0:T(1,128)}', space=vmem, size = 0x200, scoped, tag = 'scratch operand']
  %s0 = inlined_call_operand.hbm [shape: f32[2,16,32], index: 0, kind: input, shape index: {}]
  %s1 = inlined_call_operand.hbm [shape: f32[2,16,16], index: 1, kind: input, shape index: {}]
  %s2 = inlined_call_operand.hbm [shape: f32[8,32], index: 2, kind: input, shape index: {}]
  %s3 = inlined_call_operand.vmem [shape: f32[1,8], index: 3, kind: input, shape index: {}]
  %s4 = inlined_call_operand.hbm [shape: f32[2,8,32], index: 4, kind: output, shape index: {0}]
  %s5 = inlined_call_operand.hbm [shape: f32[2,8,16], index: 5, kind: output, shape index: {1}]
  %s6 = inlined_call_operand.hbm [shape: f32[2,1,8], index: 6, kind: output, shape index: {2}]
  %s7 = inlined_call_operand.hbm [shape: f32[2,1,128], index: 7, kind: output, shape index: {3}]
  %8 = xla_tuple %s4, %s5, %s6, %s7
  %s9 = sld [smem:[#allocation0]]
  $region93: #{tpu_custom_call.1} parent=0
    _
  %s11 = ssub.s32 1, %s9
  %s12 = scalar_select 0, %s11, %s9
  $region1: #{tpu_custom_call.1} parent=0
    #allocation5 [shape = 'u8[16384]{0}', space=vmem, size = 0x4000, scoped, tag = 'input window, operand 0']
    #allocation6 [shape = 's32[2]{0}', space=sflag, size = 0x8, scoped, tag = 'scoped memory for tpu_custom_call.1']
    #allocation7 [shape = 's32[2]{0}', space=sflag, size = 0x8, scoped, tag = 'scoped memory for tpu_custom_call.1']
    #allocation8 [shape = 'u8[16384]{0}', space=vmem, size = 0x4000, scoped, tag = 'input window, operand 1']
    #allocation9 [shape = 's32[2]{0}', space=sflag, size = 0x8, scoped, tag = 'scoped memory for tpu_custom_call.1']
    #allocation10 [shape = 'u8[4096]{0}', space=vmem, size = 0x1000, scoped, tag = 'input window, operand 2, single buffered']
    #allocation11 [shape = 'u8[8192]{0}', space=vmem, size = 0x2000, scoped, tag = 'output window, operand 0']
    #allocation12 [shape = 'u8[8192]{0}', space=vmem, size = 0x2000, scoped, tag = 'output window, operand 1']
    #allocation13 [shape = 's32[2]{0}', space=sflag, size = 0x8, scoped, tag = 'scoped memory for tpu_custom_call.1']
    #allocation14 [shape = 'u8[1024]{0}', space=vmem, size = 0x400, scoped, tag = 'output window, operand 2']
    #allocation15 [shape = 'u8[1024]{0}', space=vmem, size = 0x400, scoped, tag = 'output window, operand 3']
    #allocation16 [shape = 's32[2]{0}', space=sflag, size = 0x8, scoped, tag = 'scoped memory for tpu_custom_call.1']
    %13 = vsyncpa [#allocation6], 0
    %s14 = scalar_lea.sflag [#allocation6], 1
    %15 = vsyncpa %s14, 0
    %16 = vsyncpa [#allocation9], 0
    %s17 = scalar_lea.sflag [#allocation9], 1
    %18 = vsyncpa %s17, 0
    %19 = vsyncpa [#allocation7], 0
    %s20 = scalar_lea.sflag [#allocation7], 1
    %21 = vsyncpa %s20, 0
    %22 = vsyncpa [#allocation13], 0
    %s23 = scalar_lea.sflag [#allocation13], 1
    %24 = vsyncpa %s23, 0
    %25 = vsyncpa [#allocation16], 0
    %s26 = scalar_lea.sflag [#allocation16], 1
    %27 = vsyncpa %s26, 0
    loop: start=0, step=1, limit=4
    $region2: #{tpu_custom_call.1} parent=1 // loop_pre_header
      _
    $region3: #{tpu_custom_call.1} parent=1 // loop_header
      %s29 = sphi 0, %s33
      %p30 = scmp.ge.s32.totalorder %s29, 4
      %s36 = sphi 0, %s48
      %s37 = sphi 0, %s44
      %s38 = sphi 0, %s36
      %s39 = sphi 0, %s37
      %s40 = sphi 0, %s38
      %s41 = sphi 0, %s39
      %s51 = sphi 0, %s53
      %s54 = sphi 0, %s51
      %s55 = sphi 0, %s54
      %s71 = sphi 0, %s55
      %s79 = sphi 0, %s81
      %s82 = sphi 0, %s79
      %s83 = sphi 0, %s82
      %s99 = sphi 0, %s83
      %s103 = sphi 0, %s103
      %s105 = sphi 0, %s103
      %s106 = sphi 0, %s105
      %s120 = sphi 0, %s106
      %s124 = sphi 0, %s124
      %s126 = sphi 0, %s124
      %s127 = sphi 0, %s126
      %s141 = sphi 0, %s127
      %s147 = sphi 0, %s149
      %s150 = sphi 0, %s147
      %s151 = sphi 0, %s150
      %s167 = sphi 0, %s151
      %s173 = sphi 0, %s175
      %s176 = sphi 0, %s173
      %s177 = sphi 0, %s176
      %s193 = sphi 0, %s177
      %s199 = sphi 0, %s201
      %s202 = sphi 0, %s199
      %s203 = sphi 0, %s202
      %s219 = sphi 0, %s203
      %s225 = sphi 0, %s227
      %s228 = sphi 0, %s225
      %s229 = sphi 0, %s228
      %s245 = sphi 0, %s229
    $region4: #{tpu_custom_call.1} parent=1 // loop_header_branch
      %32 = sbr.rel (%p30) target = $region8
    $region5: #{tpu_custom_call.1} parent=1 // loop_body
      %s34 = ssub.s32 %s29, 1
      %s35 = ssub.s32 %s29, 2
      %s42 = sadd.s32 1, %s37
      %p43 = scmp.ge.s32.totalorder %s42, 1
      %s44 = scalar_select %p43, 0, %s42
      %s45 = sadd.s32 1, %s36
      %s46 = scalar_select %p43, %s45, %s36
      %p47 = scmp.ge.s32.totalorder %s46, 2
      %s48 = scalar_select %p47, 0, %s46
      %s49 = ssub.s32 %s36, %s48
      %p50 = scmp.eq.s32.totalorder %s49, 0
      %s52 = sadd.s32 %s51, 1
      %s53 = scalar_select %p50, %s51, %s52
      %p56 = pneg %p50
      %p57 = scmp.eq.s32.totalorder %s29, 1
      %p58 = por %p56, %p57
      %p59 = scmp.ne.s32.totalorder %s51, %s54
      %p60 = scmp.eq.s32.totalorder %s29, 0
      %p61 = por %p59, %p60
      %p62 = scmp.ne.s32.totalorder %s51, %s54
      %p63 = scmp.eq.s32.totalorder %s34, 1
      %p64 = por %p62, %p63
      %p65 = scmp.ne.s32.totalorder %s54, %s55
      %p66 = scmp.eq.s32.totalorder %s34, 0
      %p67 = por %p65, %p66
      %p68 = scmp.ne.s32.totalorder %s54, %s55
      %p69 = scmp.eq.s32.totalorder %s35, 1
      %p70 = por %p68, %p69
      %p72 = scmp.ne.s32.totalorder %s55, %s71
      %p73 = scmp.eq.s32.totalorder %s35, 0
      %p74 = por %p72, %p73
      %s75 = ssub.s32 %s36, %s48
      %s76 = ssub.s32 %s37, %s44
      %s77 = sor.u32 %s75, %s76
      %p78 = scmp.eq.s32.totalorder %s77, 0
      %s80 = sadd.s32 %s79, 1
      %s81 = scalar_select %p78, %s79, %s80
      %p84 = pneg %p78
      %p85 = scmp.eq.s32.totalorder %s29, 1
      %p86 = por %p84, %p85
      %p87 = scmp.ne.s32.totalorder %s79, %s82
      %p88 = scmp.eq.s32.totalorder %s29, 0
      %p89 = por %p87, %p88
      %p90 = scmp.ne.s32.totalorder %s79, %s82
      %p91 = scmp.eq.s32.totalorder %s34, 1
      %p92 = por %p90, %p91
      %p93 = scmp.ne.s32.totalorder %s82, %s83
      %p94 = scmp.eq.s32.totalorder %s34, 0
      %p95 = por %p93, %p94
      %p96 = scmp.ne.s32.totalorder %s82, %s83
      %p97 = scmp.eq.s32.totalorder %s35, 1
      %p98 = por %p96, %p97
      %p100 = scmp.ne.s32.totalorder %s83, %s99
      %p101 = scmp.eq.s32.totalorder %s35, 0
      %p102 = por %p100, %p101
      %s104 = sadd.s32 %s103, 1
      %p107 = scmp.eq.s32.totalorder %s29, 1
      %p108 = scmp.ne.s32.totalorder %s103, %s105
      %p109 = scmp.eq.s32.totalorder %s29, 0
      %p110 = por %p108, %p109
      %p111 = scmp.ne.s32.totalorder %s103, %s105
      %p112 = scmp.eq.s32.totalorder %s34, 1
      %p113 = por %p111, %p112
      %p114 = scmp.ne.s32.totalorder %s105, %s106
      %p115 = scmp.eq.s32.totalorder %s34, 0
      %p116 = por %p114, %p115
      %p117 = scmp.ne.s32.totalorder %s105, %s106
      %p118 = scmp.eq.s32.totalorder %s35, 1
      %p119 = por %p117, %p118
      %p121 = scmp.ne.s32.totalorder %s106, %s120
      %p122 = scmp.eq.s32.totalorder %s35, 0
      %p123 = por %p121, %p122
      %s125 = sadd.s32 %s124, 1
      %p128 = scmp.eq.s32.totalorder %s29, 1
      %p129 = scmp.ne.s32.totalorder %s124, %s126
      %p130 = scmp.eq.s32.totalorder %s29, 0
      %p131 = por %p129, %p130
      %p132 = scmp.ne.s32.totalorder %s124, %s126
      %p133 = scmp.eq.s32.totalorder %s34, 1
      %p134 = por %p132, %p133
      %p135 = scmp.ne.s32.totalorder %s126, %s127
      %p136 = scmp.eq.s32.totalorder %s34, 0
      %p137 = por %p135, %p136
      %p138 = scmp.ne.s32.totalorder %s126, %s127
      %p139 = scmp.eq.s32.totalorder %s35, 1
      %p140 = por %p138, %p139
      %p142 = scmp.ne.s32.totalorder %s127, %s141
      %p143 = scmp.eq.s32.totalorder %s35, 0
      %p144 = por %p142, %p143
      %s145 = ssub.s32 %s36, %s48
      %p146 = scmp.eq.s32.totalorder %s145, 0
      %s148 = sadd.s32 %s147, 1
      %s149 = scalar_select %p146, %s147, %s148
      %p152 = pneg %p146
      %p153 = scmp.eq.s32.totalorder %s29, 1
      %p154 = por %p152, %p153
      %p155 = scmp.ne.s32.totalorder %s147, %s150
      %p156 = scmp.eq.s32.totalorder %s29, 0
      %p157 = por %p155, %p156
      %p158 = scmp.ne.s32.totalorder %s147, %s150
      %p159 = scmp.eq.s32.totalorder %s34, 1
      %p160 = por %p158, %p159
      %p161 = scmp.ne.s32.totalorder %s150, %s151
      %p162 = scmp.eq.s32.totalorder %s34, 0
      %p163 = por %p161, %p162
      %p164 = scmp.ne.s32.totalorder %s150, %s151
      %p165 = scmp.eq.s32.totalorder %s35, 1
      %p166 = por %p164, %p165
      %p168 = scmp.ne.s32.totalorder %s151, %s167
      %p169 = scmp.eq.s32.totalorder %s35, 0
      %p170 = por %p168, %p169
      %s171 = ssub.s32 %s36, %s48
      %p172 = scmp.eq.s32.totalorder %s171, 0
      %s174 = sadd.s32 %s173, 1
      %s175 = scalar_select %p172, %s173, %s174
      %p178 = pneg %p172
      %p179 = scmp.eq.s32.totalorder %s29, 1
      %p180 = por %p178, %p179
      %p181 = scmp.ne.s32.totalorder %s173, %s176
      %p182 = scmp.eq.s32.totalorder %s29, 0
      %p183 = por %p181, %p182
      %p184 = scmp.ne.s32.totalorder %s173, %s176
      %p185 = scmp.eq.s32.totalorder %s34, 1
      %p186 = por %p184, %p185
      %p187 = scmp.ne.s32.totalorder %s176, %s177
      %p188 = scmp.eq.s32.totalorder %s34, 0
      %p189 = por %p187, %p188
      %p190 = scmp.ne.s32.totalorder %s176, %s177
      %p191 = scmp.eq.s32.totalorder %s35, 1
      %p192 = por %p190, %p191
      %p194 = scmp.ne.s32.totalorder %s177, %s193
      %p195 = scmp.eq.s32.totalorder %s35, 0
      %p196 = por %p194, %p195
      %s197 = ssub.s32 %s36, %s48
      %p198 = scmp.eq.s32.totalorder %s197, 0
      %s200 = sadd.s32 %s199, 1
      %s201 = scalar_select %p198, %s199, %s200
      %p204 = pneg %p198
      %p205 = scmp.eq.s32.totalorder %s29, 1
      %p206 = por %p204, %p205
      %p207 = scmp.ne.s32.totalorder %s199, %s202
      %p208 = scmp.eq.s32.totalorder %s29, 0
      %p209 = por %p207, %p208
      %p210 = scmp.ne.s32.totalorder %s199, %s202
      %p211 = scmp.eq.s32.totalorder %s34, 1
      %p212 = por %p210, %p211
      %p213 = scmp.ne.s32.totalorder %s202, %s203
      %p214 = scmp.eq.s32.totalorder %s34, 0
      %p215 = por %p213, %p214
      %p216 = scmp.ne.s32.totalorder %s202, %s203
      %p217 = scmp.eq.s32.totalorder %s35, 1
      %p218 = por %p216, %p217
      %p220 = scmp.ne.s32.totalorder %s203, %s219
      %p221 = scmp.eq.s32.totalorder %s35, 0
      %p222 = por %p220, %p221
      %s223 = ssub.s32 %s36, %s48
      %p224 = scmp.eq.s32.totalorder %s223, 0
      %s226 = sadd.s32 %s225, 1
      %s227 = scalar_select %p224, %s225, %s226
      %p230 = pneg %p224
      %p231 = scmp.eq.s32.totalorder %s29, 1
      %p232 = por %p230, %p231
      %p233 = scmp.ne.s32.totalorder %s225, %s228
      %p234 = scmp.eq.s32.totalorder %s29, 0
      %p235 = por %p233, %p234
      %p236 = scmp.ne.s32.totalorder %s225, %s228
      %p237 = scmp.eq.s32.totalorder %s34, 1
      %p238 = por %p236, %p237
      %p239 = scmp.ne.s32.totalorder %s228, %s229
      %p240 = scmp.eq.s32.totalorder %s34, 0
      %p241 = por %p239, %p240
      %p242 = scmp.ne.s32.totalorder %s228, %s229
      %p243 = scmp.eq.s32.totalorder %s35, 1
      %p244 = por %p242, %p243
      %p246 = scmp.ne.s32.totalorder %s229, %s245
      %p247 = scmp.eq.s32.totalorder %s35, 0
      %p248 = por %p246, %p247
      %p249 = scmp.le.s32.totalorder 1, %s29
      %p250 = scmp.lt.s32.totalorder %s29, 3
      %p251 = pnand %p249, %p250
      %p252 = pneg %p251
      // Predicated region
      $region9: #{tpu_custom_call.1} parent=5 // pred_check
        _
      $region10: #{tpu_custom_call.1} parent=5 // pred_check_branch
        %254 = sbr.rel (%p251) target = $region12
      $region11: #{tpu_custom_call.1} parent=5 // pred_region
        %s255 = ssub.s32 %s29, 1
        // Predicated region
        $region13: #{tpu_custom_call.1} parent=11 // pred_check
          %p256 = pneg %p116
        $region14: #{tpu_custom_call.1} parent=11 // pred_check_branch
          %258 = sbr.rel (%p256) target = $region16
        $region15: #{tpu_custom_call.1} parent=11 // pred_region
          %s260 = ssub.s32 128, 128
          %261 = vsyncadd [#allocation9], %s260
          %s263 = sshll.u32 [#allocation10], 4
          %s264 = int_to_ptr.vmem [resolvable:$true] %s263
          %266 = dma.hbm_to_vmem [thread:$0]  %s2, 128, %s264, [#allocation9]
        $region16: #{tpu_custom_call.1} parent=11 // pred_fallthru
          _
        // Predicated region
        $region17: #{tpu_custom_call.1} parent=11 // pred_check
          %p267 = pneg %p137
        $region18: #{tpu_custom_call.1} parent=11 // pred_check_branch
          %269 = sbr.rel (%p267) target = $region20
        $region19: #{tpu_custom_call.1} parent=11 // pred_region
          _
        $region20: #{tpu_custom_call.1} parent=11 // pred_fallthru
          _
      $region12: #{tpu_custom_call.1} parent=5 // pred_fallthru
        _
      %p270 = scmp.lt.s32.totalorder %s29, 2
      // Predicated region
      $region21: #{tpu_custom_call.1} parent=5 // pred_check
        %p271 = pneg %p270
      $region22: #{tpu_custom_call.1} parent=5 // pred_check_branch
        %273 = sbr.rel (%p271) target = $region24
      $region23: #{tpu_custom_call.1} parent=5 // pred_region
        // Predicated region
        $region25: #{tpu_custom_call.1} parent=23 // pred_check
          %p274 = pneg %p61
        $region26: #{tpu_custom_call.1} parent=23 // pred_check_branch
          %276 = sbr.rel (%p274) target = $region28
        $region27: #{tpu_custom_call.1} parent=23 // pred_region
          %s277 = sand.u32 %s51, 1
          %s278 = scalar_lea.sflag [#allocation6], %s277
          %s279 = sand.u32 %s51, 1
          %s280 = smul.addr %s279, 16
          %s281 = scalar_lea.vmem [#allocation5], %s280
          %s283 = ssub.s32 256, 256
          %284 = vsyncadd %s278, %s283
          %s285 = smul.addr %s36, 2
          %s286 = smul.addr %s285, 128
          %s287 = scalar_lea.hbm %s0, %s286
          %s288 = sshll.u32 %s281, 4
          %s289 = int_to_ptr.vmem [resolvable:$true] %s288
          %294 = dma.hbm_to_vmem [thread:$0]  %s287, 256, %s289, %s278, 128, 128, 8
        $region28: #{tpu_custom_call.1} parent=23 // pred_fallthru
          _
        // Predicated region
        $region29: #{tpu_custom_call.1} parent=23 // pred_check
          %p295 = pneg %p89
        $region30: #{tpu_custom_call.1} parent=23 // pred_check_branch
          %297 = sbr.rel (%p295) target = $region32
        $region31: #{tpu_custom_call.1} parent=23 // pred_region
          %s298 = sand.u32 %s29, 1
          %s299 = scalar_lea.sflag [#allocation9], %s298
          %s300 = sand.u32 %s79, 1
          %s301 = smul.addr %s300, 16
          %s302 = scalar_lea.vmem [#allocation8], %s301
          %s303 = smul.u32 2, %s37
          %s305 = ssub.s32 256, 256
          %306 = vsyncadd %s299, %s305
          %s307 = smul.addr %s36, 2
          %s308 = sadd.s32 %s303, %s307
          %s309 = smul.addr %s308, 128
          %s310 = scalar_lea.hbm %s1, %s309
          %s311 = sshll.u32 %s302, 4
          %s312 = int_to_ptr.vmem [resolvable:$true] %s311
          %317 = dma.hbm_to_vmem [thread:$0]  %s310, 256, %s312, %s299, 128, 128, 8
        $region32: #{tpu_custom_call.1} parent=23 // pred_fallthru
          _
      $region24: #{tpu_custom_call.1} parent=5 // pred_fallthru
        _
      %p318 = scmp.le.s32.totalorder 1, %s29
      %p319 = scmp.lt.s32.totalorder %s29, 3
      %p320 = pnand %p318, %p319
      %p321 = pneg %p320
      // Predicated region
      $region33: #{tpu_custom_call.1} parent=5 // pred_check
        _
      $region34: #{tpu_custom_call.1} parent=5 // pred_check_branch
        %323 = sbr.rel (%p320) target = $region36
      $region35: #{tpu_custom_call.1} parent=5 // pred_region
        %s324 = ssub.s32 %s29, 1
        %s325 = sand.u32 %s54, 1
        %s326 = scalar_lea.sflag [#allocation6], %s325
        %s327 = sand.u32 %s54, 1
        %s328 = smul.addr %s327, 16
        %s329 = scalar_lea.vmem [#allocation5], %s328
        // Predicated region
        $region37: #{tpu_custom_call.1} parent=35 // pred_check
          %p330 = pneg %p67
        $region38: #{tpu_custom_call.1} parent=35 // pred_check_branch
          %332 = sbr.rel (%p330) target = $region40
        $region39: #{tpu_custom_call.1} parent=35 // pred_region
          %333 = dma.done %s326, 256
        $region40: #{tpu_custom_call.1} parent=35 // pred_fallthru
          _
        %s334 = sand.u32 %s34, 1
        %s335 = scalar_lea.sflag [#allocation9], %s334
        %s336 = sand.u32 %s82, 1
        %s337 = smul.addr %s336, 16
        %s338 = scalar_lea.vmem [#allocation8], %s337
        // Predicated region
        $region41: #{tpu_custom_call.1} parent=35 // pred_check
          %p339 = pneg %p95
        $region42: #{tpu_custom_call.1} parent=35 // pred_check_branch
          %341 = sbr.rel (%p339) target = $region44
        $region43: #{tpu_custom_call.1} parent=35 // pred_region
          %342 = dma.done %s335, 256
        $region44: #{tpu_custom_call.1} parent=35 // pred_fallthru
          _
        // Predicated region
        $region45: #{tpu_custom_call.1} parent=35 // pred_check
          %p343 = pneg %p116
        $region46: #{tpu_custom_call.1} parent=35 // pred_check_branch
          %345 = sbr.rel (%p343) target = $region48
        $region47: #{tpu_custom_call.1} parent=35 // pred_region
          %346 = dma.done [#allocation9], 128
        $region48: #{tpu_custom_call.1} parent=35 // pred_fallthru
          _
        %s347 = sand.u32 %s54, 1
        %s348 = scalar_lea.sflag [#allocation6], %s347
        %s349 = sand.u32 %s54, 1
        %s350 = smul.addr %s349, 16
        %s351 = scalar_lea.vmem [#allocation5], %s350
        %p352 = pneg %p67
        %p353 = pneg %p64
        %s354 = sand.u32 %s34, 1
        %s355 = scalar_lea.sflag [#allocation9], %s354
        %s356 = sand.u32 %s82, 1
        %s357 = smul.addr %s356, 16
        %s358 = scalar_lea.vmem [#allocation8], %s357
        %p359 = pneg %p95
        %p360 = pneg %p92
        %p361 = pneg %p116
        %p362 = pneg %p113
        %p363 = pneg %p137
        %p364 = pneg %p134
        %p365 = pneg %p163
        %p366 = pneg %p160
        %s367 = sand.u32 %s150, 1
        %s368 = scalar_lea.sflag [#allocation7], %s367
        %s369 = sand.u32 %s150, 1
        %s370 = smul.addr %s369, 8
        %s371 = scalar_lea.vmem [#allocation11], %s370
        %p372 = pneg %p189
        %p373 = pneg %p186
        %s374 = sand.u32 %s34, 1
        %s375 = scalar_lea.sflag [#allocation13], %s374
        %s376 = sand.u32 %s176, 1
        %s377 = smul.addr %s376, 8
        %s378 = scalar_lea.vmem [#allocation12], %s377
        %p379 = pneg %p215
        %p380 = pneg %p212
        %s381 = sand.u32 %s34, 1
        %s382 = scalar_lea.sflag [#allocation13], %s381
        %s383 = sand.u32 %s202, 1
        %s384 = scalar_lea.vmem [#allocation14], %s383
        %p385 = pneg %p241
        %p386 = pneg %p238
        %s387 = sand.u32 %s228, 1
        %s388 = scalar_lea.sflag [#allocation16], %s387
        %s389 = sand.u32 %s228, 1
        %s390 = scalar_lea.vmem [#allocation15], %s389
        %s391 = smul.u32 2, %s39
        %p392 = scmp.eq.s32.totalorder %s39, 0
        // Predicated region
        $region49: #{tpu_custom_call.1} parent=35 // pred_check
          %p393 = pneg %p392
        $region50: #{tpu_custom_call.1} parent=35 // pred_check_branch
          %395 = sbr.rel (%p393) target = $region52
        $region51: #{tpu_custom_call.1} parent=35 // pred_region
          %v396 = vld [vmem:[%s329] sm:$0xff]
          %v397 = vld [vmem:[%s329 + $0x8] sm:$0xff]
          %v398 = vld [vmem:[#allocation10] sm:$0xff]
          %v399 = vld [vmem:[%s3] sm:$0x1]
          %v401 = vlaneseq
          %v402 = vshrl.u32 %v401, 7
          %v403 = vsub.s32 0, %v402
          %v404 = vrot.slane %v399, %v403
          %vm406 = vcmask 261120
          %v408 = vsel %vm406, %v396, 0
          %v411 = vsel %vm406, %v397, 0
          %v414 = vsel %vm406, %v398, 0
          %416 = vmatprep.subr.mxu0 0.0
          %417 = vmatpush1.xpose.msra.mxu0 0.0
          %418 = vmatprep.subr.mxu0 0.0
          %419 = vmatpush1.xpose.msra.mxu0 0.0
          %420 = vmatprep.subr.mxu0 0.0
          %421 = vmatpush1.xpose.msra.mxu0 0.0
          %422 = vmatprep.subr.mxu0 0.0
          %423 = vmatpush1.xpose.msra.mxu0 0.0
          %424 = vmatprep.subr.mxu0 0.0
          %425 = vmatpush1.xpose.msra.mxu0 0.0
          %426 = vmatprep.subr.mxu0 0.0
          %427 = vmatpush1.xpose.msra.mxu0 0.0
          %428 = vmatprep.subr.mxu0 0.0
          %429 = vmatpush1.xpose.msra.mxu0 0.0
          %430 = vmatprep.subr.mxu0 0.0
          %431 = vmatpush1.xpose.msra.mxu0 0.0
          %432 = vmatprep.subr.mxu0 0.0
          %433 = vmatpush1.xpose.msra.mxu0 0.0
          %434 = vmatprep.subr.mxu0 0.0
          %435 = vmatpush1.xpose.msra.mxu0 0.0
          %436 = vmatprep.subr.mxu0 0.0
          %437 = vmatpush1.xpose.msra.mxu0 0.0
          %438 = vmatprep.subr.mxu0 0.0
          %439 = vmatpush1.xpose.msra.mxu0 0.0
          %440 = vmatprep.subr.mxu0 0.0
          %441 = vmatpush1.xpose.msra.mxu0 0.0
          %442 = vmatprep.subr.mxu0 0.0
          %443 = vmatpush1.xpose.msra.mxu0 0.0
          %444 = vmatprep.subr.mxu0 0.0
          %445 = vmatpush1.xpose.msra.mxu0 0.0
          %446 = vmatprep.subr.mxu0 0.0
          %447 = vmatpush1.xpose.msra.mxu0 %v414
          %448 = vmatprep.subr.mxu0 0.0
          %449 = vmatpush2.xpose.msra.mxu0 0.0
          %450 = vmatprep.subr.mxu0 0.0
          %451 = vmatpush2.xpose.msra.mxu0 0.0
          %452 = vmatprep.subr.mxu0 0.0
          %453 = vmatpush2.xpose.msra.mxu0 0.0
          %454 = vmatprep.subr.mxu0 0.0
          %455 = vmatpush2.xpose.msra.mxu0 0.0
          %456 = vmatprep.subr.mxu0 0.0
          %457 = vmatpush2.xpose.msra.mxu0 0.0
          %458 = vmatprep.subr.mxu0 0.0
          %459 = vmatpush2.xpose.msra.mxu0 0.0
          %460 = vmatprep.subr.mxu0 0.0
          %461 = vmatpush2.xpose.msra.mxu0 0.0
          %462 = vmatprep.subr.mxu0 0.0
          %463 = vmatpush2.xpose.msra.mxu0 0.0
          %464 = vmatprep.subr.mxu0 0.0
          %465 = vmatpush2.xpose.msra.mxu0 0.0
          %466 = vmatprep.subr.mxu0 0.0
          %467 = vmatpush2.xpose.msra.mxu0 0.0
          %468 = vmatprep.subr.mxu0 0.0
          %469 = vmatpush2.xpose.msra.mxu0 0.0
          %470 = vmatprep.subr.mxu0 0.0
          %471 = vmatpush2.xpose.msra.mxu0 0.0
          %472 = vmatprep.subr.mxu0 0.0
          %473 = vmatpush2.xpose.msra.mxu0 0.0
          %474 = vmatprep.subr.mxu0 0.0
          %475 = vmatpush2.xpose.msra.mxu0 0.0
          %476 = vmatprep.subr.mxu0 0.0
          %477 = vmatpush2.xpose.msra.mxu0 0.0
          %478 = vmatprep.subr.mxu0 0.0
          %479 = vmatpush2.xpose.msra.mxu0 0.0
          %480 = vmatprep.mubr.f32.mxu0 0.0
          %481 = vmatmul.mubr.f32.gmra.mxu0 %v408
          %v482 = vpop.f32.mrf.mxu0
          %v483 = vadd.f32 %v404, %v482
          %v484 = vpop.f32.mrf.mxu0
          %485 = vmatprep.mubr.f32.mxu0 0.0
          %486 = vmatmul.mubr.f32.gmra.mxu0 %v411
          %v487 = vpop.f32.mrf.mxu0
          %v488 = vadd.f32 %v404, %v487
          %v489 = vpop.f32.mrf.mxu0
          %490 = vdwg.mxu0
          %vm491 = vcmask 64512
          %v492 = vsel %vm491, %v483, -inf
          %493 = vmax.xlane.f32.xlu0 %v492
          %v494 = vpop.xlane.xlu0 %493
          %v495 = vsel %vm491, %v488, -inf
          %496 = vmax.xlane.f32.xlu0 %v495
          %v497 = vpop.xlane.xlu0 %496
          %v498 = vsub.f32 %v483, %v494
          %v499 = vsub.f32 %v488, %v497
          %v500 = vmul.f32 %v498, 1.442695
          %v501 = vpow.pop %v500
          %v502 = vmul.f32 %v499, 1.442695
          %v503 = vpow.pop %v502
          %v504 = vsel %vm491, %v501, 0.0
          %505 = vadd.xlane.f32.xlu0 %v504
          %v506 = vpop.xlane.xlu0 %505
          %v507 = vsel %vm491, %v503, 0.0
          %508 = vadd.xlane.f32.xlu0 %v507
          %v509 = vpop.xlane.xlu0 %508
          %v510 = vrcp.pop %v506
          %v511 = vmul.f32 1.0, %v510
          %v512 = vrcp.pop %v509
          %v513 = vmul.f32 1.0, %v512
          %v514 = vmul.f32 %v501, %v511
          %v515 = vmul.f32 %v503, %v513
          %516 = vst.msk [vmem:[#allocation2] sm:$0xff] %vm491, %v514
          %517 = vst.msk [vmem:[#allocation2 + $0x8] sm:$0xff] %vm491, %v515
          %518 = vxpose.xlu0.b32.start [1/16] %v514, 128
          %519 = vxpose.xlu0.b32.cont [2/16] %v515, 128
          %520 = vxpose.xlu0.b32.cont [3/16] 0.0, 128
          %521 = vxpose.xlu0.b32.cont [4/16] 0.0, 128
          %522 = vxpose.xlu0.b32.cont [5/16] 0.0, 128
          %523 = vxpose.xlu0.b32.cont [6/16] 0.0, 128
          %524 = vxpose.xlu0.b32.cont [7/16] 0.0, 128
          %525 = vxpose.xlu0.b32.cont [8/16] 0.0, 128
          %526 = vxpose.xlu0.b32.cont [9/16] 0.0, 128
          %527 = vxpose.xlu0.b32.cont [10/16] 0.0, 128
          %528 = vxpose.xlu0.b32.cont [11/16] 0.0, 128
          %529 = vxpose.xlu0.b32.cont [12/16] 0.0, 128
          %530 = vxpose.xlu0.b32.cont [13/16] 0.0, 128
          %531 = vxpose.xlu0.b32.cont [14/16] 0.0, 128
          %532 = vxpose.xlu0.b32.cont [15/16] 0.0, 128
          %533 = vxpose.xlu0.b32.end [16/16] 0.0, 128
          %v534 = vpop.trf.xlu0
          %v535 = vpop.trf.xlu0
          %v536 = vpop.trf.xlu0
          %v537 = vpop.trf.xlu0
          %v538 = vpop.trf.xlu0
          %v539 = vpop.trf.xlu0
          %v540 = vpop.trf.xlu0
          %v541 = vpop.trf.xlu0
          %v542 = vpop.trf.xlu0
          %v543 = vpop.trf.xlu0
          %v544 = vpop.trf.xlu0
          %v545 = vpop.trf.xlu0
          %v546 = vpop.trf.xlu0
          %v547 = vpop.trf.xlu0
          %v548 = vpop.trf.xlu0
          %v549 = vpop.trf.xlu0
          %vm550 = vcmask 130048
          %551 = vst.msk [vmem:[%s378] sm:$0xff] %vm550, %v534
          %v552 = vsel %vm491, %v514, 0.0
          %v553 = vsel %vm491, %v515, 0.0
          %v554 = vadd.f32 %v552, %v553
          %v555 = vrot.slane %v554, 4
          %v556 = vadd.f32 %v554, %v555
          %v557 = vrot.slane %v556, 2
          %v558 = vadd.f32 %v556, %v557
          %v559 = vrot.slane %v558, 1
          %v560 = vadd.f32 %v558, %v559
          %vm561 = vcmask 57344
          %562 = vst.msk [vmem:[%s384] sm:$0x1] %vm561, %v560
          %v563 = vrcp.pop %v560
          %v564 = vmul.f32 1.0, %v563
          %v565 = vmul.f32 %v514, %v564
          %v566 = vmul.f32 %v515, %v564
          %567 = vxpose.xlu0.b32.start [1/16] %v565, 128
          %568 = vxpose.xlu0.b32.cont [2/16] %v566, 128
          %569 = vxpose.xlu0.b32.cont [3/16] 0.0, 128
          %570 = vxpose.xlu0.b32.cont [4/16] 0.0, 128
          %571 = vxpose.xlu0.b32.cont [5/16] 0.0, 128
          %572 = vxpose.xlu0.b32.cont [6/16] 0.0, 128
          %573 = vxpose.xlu0.b32.cont [7/16] 0.0, 128
          %574 = vxpose.xlu0.b32.cont [8/16] 0.0, 128
          %575 = vxpose.xlu0.b32.cont [9/16] 0.0, 128
          %576 = vxpose.xlu0.b32.cont [10/16] 0.0, 128
          %577 = vxpose.xlu0.b32.cont [11/16] 0.0, 128
          %578 = vxpose.xlu0.b32.cont [12/16] 0.0, 128
          %579 = vxpose.xlu0.b32.cont [13/16] 0.0, 128
          %580 = vxpose.xlu0.b32.cont [14/16] 0.0, 128
          %581 = vxpose.xlu0.b32.cont [15/16] 0.0, 128
          %582 = vxpose.xlu0.b32.end [16/16] 0.0, 128
          %v583 = vpop.trf.xlu0
          %v584 = vpop.trf.xlu0
          %v585 = vpop.trf.xlu0
          %v586 = vpop.trf.xlu0
          %v587 = vpop.trf.xlu0
          %v588 = vpop.trf.xlu0
          %v589 = vpop.trf.xlu0
          %v590 = vpop.trf.xlu0
          %v591 = vpop.trf.xlu0
          %v592 = vpop.trf.xlu0
          %v593 = vpop.trf.xlu0
          %v594 = vpop.trf.xlu0
          %v595 = vpop.trf.xlu0
          %v596 = vpop.trf.xlu0
          %v597 = vpop.trf.xlu0
          %v598 = vpop.trf.xlu0
          %v600 = vsel %vm550, %v583, 0
          %602 = vmatprep.subr.mxu0 0.0
          %603 = vmatpush1.msra.mxu0 0.0
          %604 = vmatprep.subr.mxu0 0.0
          %605 = vmatpush1.msra.mxu0 0.0
          %606 = vmatprep.subr.mxu0 0.0
          %607 = vmatpush1.msra.mxu0 0.0
          %608 = vmatprep.subr.mxu0 0.0
          %609 = vmatpush1.msra.mxu0 0.0
          %610 = vmatprep.subr.mxu0 0.0
          %611 = vmatpush1.msra.mxu0 0.0
          %612 = vmatprep.subr.mxu0 0.0
          %613 = vmatpush1.msra.mxu0 0.0
          %614 = vmatprep.subr.mxu0 0.0
          %615 = vmatpush1.msra.mxu0 0.0
          %616 = vmatprep.subr.mxu0 0.0
          %617 = vmatpush1.msra.mxu0 0.0
          %618 = vmatprep.subr.mxu0 0.0
          %619 = vmatpush1.msra.mxu0 0.0
          %620 = vmatprep.subr.mxu0 0.0
          %621 = vmatpush1.msra.mxu0 0.0
          %622 = vmatprep.subr.mxu0 0.0
          %623 = vmatpush1.msra.mxu0 0.0
          %624 = vmatprep.subr.mxu0 0.0
          %625 = vmatpush1.msra.mxu0 0.0
          %626 = vmatprep.subr.mxu0 0.0
          %627 = vmatpush1.msra.mxu0 0.0
          %628 = vmatprep.subr.mxu0 0.0
          %629 = vmatpush1.msra.mxu0 0.0
          %630 = vmatprep.subr.mxu0 0.0
          %631 = vmatpush1.msra.mxu0 %v397
          %632 = vmatprep.subr.mxu0 0.0
          %633 = vmatpush1.msra.mxu0 %v396
          %634 = vmatprep.subr.mxu0 0.0
          %635 = vmatpush2.msra.mxu0 0.0
          %636 = vmatprep.subr.mxu0 0.0
          %637 = vmatpush2.msra.mxu0 0.0
          %638 = vmatprep.subr.mxu0 0.0
          %639 = vmatpush2.msra.mxu0 0.0
          %640 = vmatprep.subr.mxu0 0.0
          %641 = vmatpush2.msra.mxu0 0.0
          %642 = vmatprep.subr.mxu0 0.0
          %643 = vmatpush2.msra.mxu0 0.0
          %644 = vmatprep.subr.mxu0 0.0
          %645 = vmatpush2.msra.mxu0 0.0
          %646 = vmatprep.subr.mxu0 0.0
          %647 = vmatpush2.msra.mxu0 0.0
          %648 = vmatprep.subr.mxu0 0.0
          %649 = vmatpush2.msra.mxu0 0.0
          %650 = vmatprep.subr.mxu0 0.0
          %651 = vmatpush2.msra.mxu0 0.0
          %652 = vmatprep.subr.mxu0 0.0
          %653 = vmatpush2.msra.mxu0 0.0
          %654 = vmatprep.subr.mxu0 0.0
          %655 = vmatpush2.msra.mxu0 0.0
          %656 = vmatprep.subr.mxu0 0.0
          %657 = vmatpush2.msra.mxu0 0.0
          %658 = vmatprep.subr.mxu0 0.0
          %659 = vmatpush2.msra.mxu0 0.0
          %660 = vmatprep.subr.mxu0 0.0
          %661 = vmatpush2.msra.mxu0 0.0
          %662 = vmatprep.subr.mxu0 0.0
          %663 = vmatpush2.msra.mxu0 0.0
          %664 = vmatprep.subr.mxu0 0.0
          %665 = vmatpush2.msra.mxu0 0.0
          %666 = vmatprep.mubr.f32.mxu0 0.0
          %667 = vmatmul.mubr.f32.gmra.mxu0 %v600
          %v668 = vpop.f32.mrf.mxu0
          %v669 = vadd.f32 0.0, %v668
          %v670 = vpop.f32.mrf.mxu0
          %671 = vdwg.mxu0
          %vm672 = vcmp.gt.f32.partialorder %v669, 0.0
          %v673 = vmul.f32 %v669, 1.442695
          %v674 = vpow.pop %v673
          %v675 = vsub.f32 %v674, 1.0
          %v676 = vmul.f32 %v675, 1.6732632
          %v677 = vsel %vm672, %v669, %v676
          %v678 = vmul.f32 %v677, 1.050701
          %679 = vst.msk [vmem:[%s371] sm:$0xff] %vm406, %v678
          %680 = vst.msk [vmem:[#allocation3] sm:$0x1] %vm561, 0.0
          %681 = vst.msk [vmem:[#allocation4] sm:$0x1] %vm561, 0.0
        $region52: #{tpu_custom_call.1} parent=35 // pred_fallthru
          _
        %v682 = vld [vmem:[%s338] sm:$0xff]
        %v683 = vld [vmem:[%s338 + $0x8] sm:$0xff]
        %s684 = smul.u32 %s39, 16
        %v685 = vld [vmem:[#allocation2] sm:$0xff]
        %v686 = vld [vmem:[#allocation2 + $0x8] sm:$0xff]
        %vm687 = vcmask 130048
        %v689 = vsel %vm687, %v682, 0
        %v692 = vsel %vm687, %v683, 0
        %694 = vmatprep.subr.mxu0 0.0
        %695 = vmatpush1.msra.mxu0 0.0
        %696 = vmatprep.subr.mxu0 0.0
        %697 = vmatpush1.msra.mxu0 0.0
        %698 = vmatprep.subr.mxu0 0.0
        %699 = vmatpush1.msra.mxu0 0.0
        %700 = vmatprep.subr.mxu0 0.0
        %701 = vmatpush1.msra.mxu0 0.0
        %702 = vmatprep.subr.mxu0 0.0
        %703 = vmatpush1.msra.mxu0 0.0
        %704 = vmatprep.subr.mxu0 0.0
        %705 = vmatpush1.msra.mxu0 0.0
        %706 = vmatprep.subr.mxu0 0.0
        %707 = vmatpush1.msra.mxu0 0.0
        %708 = vmatprep.subr.mxu0 0.0
        %709 = vmatpush1.msra.mxu0 0.0
        %710 = vmatprep.subr.mxu0 0.0
        %711 = vmatpush1.msra.mxu0 0.0
        %712 = vmatprep.subr.mxu0 0.0
        %713 = vmatpush1.msra.mxu0 0.0
        %714 = vmatprep.subr.mxu0 0.0
        %715 = vmatpush1.msra.mxu0 0.0
        %716 = vmatprep.subr.mxu0 0.0
        %717 = vmatpush1.msra.mxu0 0.0
        %718 = vmatprep.subr.mxu0 0.0
        %719 = vmatpush1.msra.mxu0 0.0
        %720 = vmatprep.subr.mxu0 0.0
        %721 = vmatpush1.msra.mxu0 0.0
        %722 = vmatprep.subr.mxu0 0.0
        %723 = vmatpush1.msra.mxu0 %v686
        %724 = vmatprep.subr.mxu0 0.0
        %725 = vmatpush1.msra.mxu0 %v685
        %726 = vmatprep.subr.mxu0 0.0
        %727 = vmatpush2.msra.mxu0 0.0
        %728 = vmatprep.subr.mxu0 0.0
        %729 = vmatpush2.msra.mxu0 0.0
        %730 = vmatprep.subr.mxu0 0.0
        %731 = vmatpush2.msra.mxu0 0.0
        %732 = vmatprep.subr.mxu0 0.0
        %733 = vmatpush2.msra.mxu0 0.0
        %734 = vmatprep.subr.mxu0 0.0
        %735 = vmatpush2.msra.mxu0 0.0
        %736 = vmatprep.subr.mxu0 0.0
        %737 = vmatpush2.msra.mxu0 0.0
        %738 = vmatprep.subr.mxu0 0.0
        %739 = vmatpush2.msra.mxu0 0.0
        %740 = vmatprep.subr.mxu0 0.0
        %741 = vmatpush2.msra.mxu0 0.0
        %742 = vmatprep.subr.mxu0 0.0
        %743 = vmatpush2.msra.mxu0 0.0
        %744 = vmatprep.subr.mxu0 0.0
        %745 = vmatpush2.msra.mxu0 0.0
        %746 = vmatprep.subr.mxu0 0.0
        %747 = vmatpush2.msra.mxu0 0.0
        %748 = vmatprep.subr.mxu0 0.0
        %749 = vmatpush2.msra.mxu0 0.0
        %750 = vmatprep.subr.mxu0 0.0
        %751 = vmatpush2.msra.mxu0 0.0
        %752 = vmatprep.subr.mxu0 0.0
        %753 = vmatpush2.msra.mxu0 0.0
        %754 = vmatprep.subr.mxu0 0.0
        %755 = vmatpush2.msra.mxu0 0.0
        %756 = vmatprep.subr.mxu0 0.0
        %757 = vmatpush2.msra.mxu0 0.0
        %758 = vmatprep.mubr.f32.mxu0 0.0
        %759 = vmatmul.mubr.f32.gmra.mxu0 %v689
        %v760 = vpop.f32.mrf.mxu0
        %v761 = vadd.f32 0.0, %v760
        %v762 = vpop.f32.mrf.mxu0
        %763 = vmatprep.mubr.f32.mxu0 0.0
        %764 = vmatmul.mubr.f32.gmra.mxu0 %v692
        %v765 = vpop.f32.mrf.mxu0
        %v766 = vadd.f32 0.0, %v765
        %v767 = vpop.f32.mrf.mxu0
        %768 = vdwg.mxu0
        %s769 = scalar_lea.vmem [#allocation2], %s684
        %v770 = vld [vmem:[%s769] sm:$0xff]
        %v771 = vld [vmem:[%s769 + $0x8] sm:$0xff]
        %v772 = vld [vmem:[#allocation3] sm:$0x1]
        %v773 = vmul.f32 %v761, %v770
        %v774 = vmul.f32 %v766, %v771
        %vm775 = vcmask 64512
        %v776 = vsel %vm775, %v773, 0.0
        %v777 = vsel %vm775, %v774, 0.0
        %v778 = vadd.f32 %v776, %v777
        %v779 = vrot.slane %v778, 4
        %v780 = vadd.f32 %v778, %v779
        %v781 = vrot.slane %v780, 2
        %v782 = vadd.f32 %v780, %v781
        %v783 = vrot.slane %v782, 1
        %v784 = vadd.f32 %v782, %v783
        %v785 = vadd.f32 %v772, %v784
        %vm786 = vcmask 57344
        %787 = vst.msk [vmem:[#allocation3] sm:$0x1] %vm786, %v785
        %v788 = vld [vmem:[#allocation4] sm:$0x1]
        %v789 = vsel %vm775, %v761, 0.0
        %v790 = vsel %vm775, %v766, 0.0
        %v791 = vadd.f32 %v789, %v790
        %v792 = vrot.slane %v791, 4
        %v793 = vadd.f32 %v791, %v792
        %v794 = vrot.slane %v793, 2
        %v795 = vadd.f32 %v793, %v794
        %v796 = vrot.slane %v795, 1
        %v797 = vadd.f32 %v795, %v796
        %v798 = vadd.f32 %v788, %v797
        %799 = vst.msk [vmem:[#allocation4] sm:$0x1] %vm786, %v798
        // Predicated region
        $region53: #{tpu_custom_call.1} parent=35 // pred_check
          %p800 = pneg %p392
        $region54: #{tpu_custom_call.1} parent=35 // pred_check_branch
          %802 = sbr.rel (%p800) target = $region56
        $region55: #{tpu_custom_call.1} parent=35 // pred_region
          %v803 = vld [vmem:[#allocation4] sm:$0x1]
          %v804 = vsel %vm786, %v803, 0.0
          %805 = vadd.xlane.f32.xlu0 %v804
          %v806 = vpop.xlane.xlu0 %805
          %v807 = vrot.slane %v806, 4
          %v808 = vadd.f32 %v806, %v807
          %v809 = vrot.slane %v808, 2
          %v810 = vadd.f32 %v808, %v809
          %v811 = vrot.slane %v810, 1
          %v812 = vadd.f32 %v810, %v811
          %s813 = vtos %v812
          %v814 = vmul.f32 %v803, %v803
          %s815 = smul.f32 %s813, 2.0
          %v816 = vstv %s815
          %v817 = vrcp.pop %v816
          %v818 = vmul.f32 %v814, %v817
          %v819 = vld [vmem:[#allocation3] sm:$0x1]
          %v820 = vsub.f32 %v819, %v818
          %v821 = vsel %vm786, %v820, 0.0
          %822 = vadd.xlane.f32.xlu0 %v821
          %v823 = vpop.xlane.xlu0 %822
          %v824 = vrot.slane %v823, 4
          %v825 = vadd.f32 %v823, %v824
          %v826 = vrot.slane %v825, 2
          %v827 = vadd.f32 %v825, %v826
          %v828 = vrot.slane %v827, 1
          %v829 = vadd.f32 %v827, %v828
          %s830 = vtos %v829
          %v831 = vlaneseq
          %v832 = vand.u32 %v831, 127
          %vm833 = vcmp.eq.s32.totalorder %v832, 0
          %vm834 = vcmp.eq.s32.totalorder %v832, 1
          %v835 = vstv %s813
          %v836 = vsel %vm834, %v835, 0.0
          %v837 = vstv %s830
          %v838 = vsel %vm833, %v837, %v836
          %839 = vst [vmem:[%s390] sm:$0x1] %v838
        $region56: #{tpu_custom_call.1} parent=35 // pred_fallthru
          _
        %s840 = sand.u32 %s150, 1
        %s841 = scalar_lea.sflag [#allocation7], %s840
        %s842 = sand.u32 %s150, 1
        %s843 = smul.addr %s842, 8
        %s844 = scalar_lea.vmem [#allocation11], %s843
        %s845 = sand.u32 %s34, 1
        %s846 = scalar_lea.sflag [#allocation13], %s845
        %s847 = sand.u32 %s176, 1
        %s848 = smul.addr %s847, 8
        %s849 = scalar_lea.vmem [#allocation12], %s848
        %s850 = sand.u32 %s34, 1
        %s851 = scalar_lea.sflag [#allocation13], %s850
        %s852 = sand.u32 %s202, 1
        %s853 = scalar_lea.vmem [#allocation14], %s852
        %s854 = sand.u32 %s228, 1
        %s855 = scalar_lea.sflag [#allocation16], %s854
        %s856 = sand.u32 %s228, 1
        %s857 = scalar_lea.vmem [#allocation15], %s856
        // Predicated region
        $region57: #{tpu_custom_call.1} parent=35 // pred_check
          %p858 = pneg %p160
        $region58: #{tpu_custom_call.1} parent=35 // pred_check_branch
          %860 = sbr.rel (%p858) target = $region60
        $region59: #{tpu_custom_call.1} parent=35 // pred_region
          %s862 = ssub.s32 128, 128
          %863 = vsyncadd %s841, %s862
          %s864 = smul.addr %s38, 128
          %s865 = scalar_lea.hbm %s4, %s864
          %s867 = sshll.u32 %s844, 4
          %s868 = int_to_ptr.vmem [resolvable:$true] %s867
          %870 = dma.vmem_to_hbm [thread:$0]  %s868, 128, %s865, %s841
        $region60: #{tpu_custom_call.1} parent=35 // pred_fallthru
          _
        // Predicated region
        $region61: #{tpu_custom_call.1} parent=35 // pred_check
          %p871 = pneg %p186
        $region62: #{tpu_custom_call.1} parent=35 // pred_check_branch
          %873 = sbr.rel (%p871) target = $region64
        $region63: #{tpu_custom_call.1} parent=35 // pred_region
          %s875 = ssub.s32 128, 128
          %876 = vsyncadd %s846, %s875
          %s877 = smul.addr %s38, 128
          %s878 = scalar_lea.hbm %s5, %s877
          %s880 = sshll.u32 %s849, 4
          %s881 = int_to_ptr.vmem [resolvable:$true] %s880
          %883 = dma.vmem_to_hbm [thread:$0]  %s881, 128, %s878, %s846
        $region64: #{tpu_custom_call.1} parent=35 // pred_fallthru
          _
        // Predicated region
        $region65: #{tpu_custom_call.1} parent=35 // pred_check
          %p884 = pneg %p212
        $region66: #{tpu_custom_call.1} parent=35 // pred_check_branch
          %886 = sbr.rel (%p884) target = $region68
        $region67: #{tpu_custom_call.1} parent=35 // pred_region
          %s888 = ssub.s32 16, 16
          %889 = vsyncadd %s851, %s888
          %s890 = smul.addr %s38, 16
          %s891 = scalar_lea.hbm %s6, %s890
          %s893 = sshll.u32 %s853, 4
          %s894 = int_to_ptr.vmem [resolvable:$true] %s893
          %896 = dma.vmem_to_hbm [thread:$0]  %s894, 16, %s891, %s851
        $region68: #{tpu_custom_call.1} parent=35 // pred_fallthru
          _
        // Predicated region
        $region69: #{tpu_custom_call.1} parent=35 // pred_check
          %p897 = pneg %p238
        $region70: #{tpu_custom_call.1} parent=35 // pred_check_branch
          %899 = sbr.rel (%p897) target = $region72
        $region71: #{tpu_custom_call.1} parent=35 // pred_region
          %s901 = ssub.s32 16, 16
          %902 = vsyncadd %s855, %s901
          %s903 = smul.addr %s38, 16
          %s904 = scalar_lea.hbm %s7, %s903
          %s906 = sshll.u32 %s857, 4
          %s907 = int_to_ptr.vmem [resolvable:$true] %s906
          %909 = dma.vmem_to_hbm [thread:$0]  %s907, 16, %s904, %s855
        $region72: #{tpu_custom_call.1} parent=35 // pred_fallthru
          _
      $region36: #{tpu_custom_call.1} parent=5 // pred_fallthru
        _
      %p910 = scmp.le.s32.totalorder 2, %s29
      // Predicated region
      $region73: #{tpu_custom_call.1} parent=5 // pred_check
        %p911 = pneg %p910
      $region74: #{tpu_custom_call.1} parent=5 // pred_check_branch
        %913 = sbr.rel (%p911) target = $region76
      $region75: #{tpu_custom_call.1} parent=5 // pred_region
        %s914 = ssub.s32 %s29, 2
        // Predicated region
        $region77: #{tpu_custom_call.1} parent=75 // pred_check
          %p915 = pneg %p166
        $region78: #{tpu_custom_call.1} parent=75 // pred_check_branch
          %917 = sbr.rel (%p915) target = $region80
        $region79: #{tpu_custom_call.1} parent=75 // pred_region
          %s918 = sand.u32 %s151, 1
          %s919 = scalar_lea.sflag [#allocation7], %s918
          %s920 = sand.u32 %s151, 1
          %s921 = smul.addr %s920, 8
          %s922 = scalar_lea.vmem [#allocation11], %s921
          %923 = dma.done %s919, 128
        $region80: #{tpu_custom_call.1} parent=75 // pred_fallthru
          _
        // Predicated region
        $region81: #{tpu_custom_call.1} parent=75 // pred_check
          %p924 = pneg %p192
        $region82: #{tpu_custom_call.1} parent=75 // pred_check_branch
          %926 = sbr.rel (%p924) target = $region84
        $region83: #{tpu_custom_call.1} parent=75 // pred_region
          %s927 = sand.u32 %s35, 1
          %s928 = scalar_lea.sflag [#allocation13], %s927
          %s929 = sand.u32 %s177, 1
          %s930 = smul.addr %s929, 8
          %s931 = scalar_lea.vmem [#allocation12], %s930
          %932 = dma.done %s928, 128
        $region84: #{tpu_custom_call.1} parent=75 // pred_fallthru
          _
        // Predicated region
        $region85: #{tpu_custom_call.1} parent=75 // pred_check
          %p933 = pneg %p218
        $region86: #{tpu_custom_call.1} parent=75 // pred_check_branch
          %935 = sbr.rel (%p933) target = $region88
        $region87: #{tpu_custom_call.1} parent=75 // pred_region
          %s936 = sand.u32 %s35, 1
          %s937 = scalar_lea.sflag [#allocation13], %s936
          %s938 = sand.u32 %s203, 1
          %s939 = scalar_lea.vmem [#allocation14], %s938
          %940 = dma.done %s937, 16
        $region88: #{tpu_custom_call.1} parent=75 // pred_fallthru
          _
        // Predicated region
        $region89: #{tpu_custom_call.1} parent=75 // pred_check
          %p941 = pneg %p244
        $region90: #{tpu_custom_call.1} parent=75 // pred_check_branch
          %943 = sbr.rel (%p941) target = $region92
        $region91: #{tpu_custom_call.1} parent=75 // pred_region
          %s944 = sand.u32 %s229, 1
          %s945 = scalar_lea.sflag [#allocation16], %s944
          %s946 = sand.u32 %s229, 1
          %s947 = scalar_lea.vmem [#allocation15], %s946
          %948 = dma.done %s945, 16
        $region92: #{tpu_custom_call.1} parent=75 // pred_fallthru
          _
      $region76: #{tpu_custom_call.1} parent=5 // pred_fallthru
        _
    $region6: #{tpu_custom_call.1} parent=1 // loop_footer
      %s33 = sadd.s32 1, %s29
    $region7: #{tpu_custom_call.1} parent=1 // loop_footer_branch
      %28 = sbr.rel target = $region3
    $region8: #{tpu_custom_call.1} parent=1 // loop_exit
      _
    %949 = vsyncpa [#allocation6], 1
    %s950 = scalar_lea.sflag [#allocation6], 1
    %951 = vsyncpa %s950, 1
    %952 = vsyncpa [#allocation9], 1
    %s953 = scalar_lea.sflag [#allocation9], 1
    %954 = vsyncpa %s953, 1
    %955 = vsyncpa [#allocation7], 1
    %s956 = scalar_lea.sflag [#allocation7], 1
    %957 = vsyncpa %s956, 1
    %958 = vsyncpa [#allocation13], 1
    %s959 = scalar_lea.sflag [#allocation13], 1
    %960 = vsyncpa %s959, 1
    %961 = vsyncpa [#allocation16], 1
    %s962 = scalar_lea.sflag [#allocation16], 1
    %963 = vsyncpa %s962, 1

</llo_original>
